<compile_context>
chip_gen: v7x
topology: tpu7x:2x2x1
jax: 0.10.0
libtpu: 0.0.40
codegen_flags: <defaults>
</compile_context>

<pallas_src>
import functools

import jax
import jax.numpy as jnp
from jax import lax
from jax.experimental import pallas as pl
from jax.experimental.pallas import tpu as pltpu


def _efocal_kernel_nc(x_ref, tgt_ref, alpha_ref, out_ref, *, gamma, n_rows, tile_n):
    """Natural (TILE_N, C) layout (classes on lanes). Used when C >= 128."""
    i = pl.program_id(0)

    x = x_ref[...].astype(jnp.float32)                # (T, C)
    tgt = tgt_ref[...]                                # (T, 1) int32
    alpha_row = alpha_ref[...].astype(jnp.float32)    # (1, C)
    T, C = x.shape

    col_ids = lax.broadcasted_iota(jnp.int32, (T, C), 1)
    sel = col_ids == tgt                              # bool one-hot (no f32 mask)

    # Log-sum-exp gather of the target-class softmax prob (no (T, C) softmax).
    m = jnp.max(x, axis=1, keepdims=True)                        # (T, 1)
    denom = jnp.sum(jnp.exp(x - m), axis=1, keepdims=True)       # (T, 1)
    x_t = jnp.sum(jnp.where(sel, x, 0.0), axis=1, keepdims=True)  # target logit
    log_p = (x_t - m) - jnp.log(denom)                           # (T, 1)
    probs = jnp.exp(log_p)                                       # (T, 1)

    # Per-class alpha gather as a VPU select-reduce (no MXU involvement).
    alpha_t = jnp.sum(jnp.where(sel, alpha_row, 0.0), axis=1, keepdims=True)

    batch_loss = -alpha_t * jnp.exp(-gamma * probs) * log_p      # (T, 1)

    # Mask tail rows of the final partial tile.  Keep the `where`: select does
    # not propagate NaN/Inf from the unselected branch (a mask-multiply would).
    row_ids = i * tile_n + lax.broadcasted_iota(jnp.int32, (T, 1), 0)
    batch_loss = jnp.where(row_ids < n_rows, batch_loss, 0.0)

    out_ref[...] = jnp.sum(batch_loss, keepdims=True)            # (1, 1) partial


def _efocal_kernel_cn(x_ref, tgt_ref, alpha_ref, out_ref, *, gamma, n_rows, tile_n):
    """Lane-dense (C, TILE_N) layout (batch on lanes). Used when C < 128."""
    i = pl.program_id(0)

    x = x_ref[...].astype(jnp.float32)                # (C, T)
    tgt = tgt_ref[...]                                # (1, T) int32
    alpha_col = alpha_ref[...].astype(jnp.float32)    # (C, 1)
    C, T = x.shape

    class_ids = lax.broadcasted_iota(jnp.int32, (C, T), 0)
    sel = class_ids == tgt                            # (C, T) bool one-hot

    m = jnp.max(x, axis=0, keepdims=True)                        # (1, T)
    denom = jnp.sum(jnp.exp(x - m), axis=0, keepdims=True)       # (1, T)
    x_t = jnp.sum(jnp.where(sel, x, 0.0), axis=0, keepdims=True)
    log_p = (x_t - m) - jnp.log(denom)                           # (1, T)
    probs = jnp.exp(log_p)

    alpha_t = jnp.sum(jnp.where(sel, alpha_col, 0.0), axis=0, keepdims=True)

    batch_loss = -alpha_t * jnp.exp(-gamma * probs) * log_p      # (1, T)

    col_ids = i * tile_n + lax.broadcasted_iota(jnp.int32, (1, T), 1)
    batch_loss = jnp.where(col_ids < n_rows, batch_loss, 0.0)

    out_ref[...] = jnp.sum(batch_loss, keepdims=True)            # (1, 1) partial


def efocal_loss(inputs, targets, alpha, gamma=2.0, size_average=True,
                max_tile_n=None, vmem_tile_budget_bytes=24 * 1024 * 1024):
    """inputs: (N, C) float, targets: (N,) int, alpha: (C,) or (C, 1) float."""
    N, C = inputs.shape
    targets = targets.astype(jnp.int32)
    alpha_f32 = alpha.reshape(-1).astype(jnp.float32)
    itemsize = jnp.dtype(inputs.dtype).itemsize

    lane_dense = C < 128   # small class count -> put the batch dim on the lanes

    # VMEM-budget-aware tile sizing: double-buffered logits ~ 2 * T * C * itemsize.
    max_rows = vmem_tile_budget_bytes // max(2 * C * itemsize, 1)
    tile_cap = int(min(max(max_rows, 8), 8192))
    if max_tile_n is not None:
        tile_cap = min(tile_cap, int(max_tile_n))

    if lane_dense:
        TILE_N = N if N <= tile_cap else max(128, (tile_cap // 128) * 128)
    else:
        TILE_N = N if N <= tile_cap else max(16, (tile_cap // 16) * 16)
    n_tiles = pl.cdiv(N, TILE_N)

    if lane_dense:
        x_in = inputs.T                               # (C, N): batch on lanes
        tgt_in = targets.reshape(1, N)
        alpha_in = alpha_f32.reshape(C, 1)
        kernel = functools.partial(_efocal_kernel_cn, gamma=float(gamma),
                                   n_rows=N, tile_n=TILE_N)
        in_specs = [
            pl.BlockSpec((C, TILE_N), lambda i: (0, i)),     # logits tile
            pl.BlockSpec((1, TILE_N), lambda i: (0, i)),     # targets tile
            pl.BlockSpec((C, 1), lambda i: (0, 0)),          # alpha (resident)
        ]
    else:
        x_in = inputs                                 # (N, C)
        tgt_in = targets.reshape(N, 1)
        alpha_in = alpha_f32.reshape(1, C)
        kernel = functools.partial(_efocal_kernel_nc, gamma=float(gamma),
                                   n_rows=N, tile_n=TILE_N)
        in_specs = [
            pl.BlockSpec((TILE_N, C), lambda i: (i, 0)),     # logits tile
            pl.BlockSpec((TILE_N, 1), lambda i: (i, 0)),     # targets tile
            pl.BlockSpec((1, C), lambda i: (0, 0)),          # alpha (resident)
        ]

    # Scoped-VMEM limit: ~48 MiB on v7x (64 MiB physical), ~96 MiB on v5e/v6e.
    try:
        phys_vmem = int(pltpu.get_tpu_info().vmem_capacity_bytes)
    except Exception:  # conservative (v7x-sized) fallback
        phys_vmem = 64 * 1024 * 1024
    vmem_limit = int(min(phys_vmem * 3 // 4, 96 * 1024 * 1024))

    partials = pl.pallas_call(
        kernel,
        out_shape=jax.ShapeDtypeStruct((n_tiles, 1), jnp.float32),
        grid_spec=pltpu.PrefetchScalarGridSpec(
            num_scalar_prefetch=0,
            grid=(n_tiles,),
            in_specs=in_specs,
            out_specs=pl.BlockSpec((1, 1), lambda i: (i, 0)),  # per-tile partial
        ),
        compiler_params=pltpu.CompilerParams(
            dimension_semantics=("parallel",),   # no cross-step dependency left
            vmem_limit_bytes=vmem_limit,
        ),
    )(x_in, tgt_in, alpha_in)

    total = jnp.sum(partials)
    if size_average:
        total = total / jnp.float32(N)
    return total


def _reference_loss(x, targets, alpha, gamma, size_average=True):
    P = jax.nn.softmax(x.astype(jnp.float32), axis=1)
    n = x.shape[0]
    probs = P[jnp.arange(n), targets]
    a = alpha.reshape(-1).astype(jnp.float32)[targets]
    batch_loss = -a * jnp.exp(-gamma * probs) * jnp.log(probs)
    return jnp.mean(batch_loss) if size_average else jnp.sum(batch_loss)


if __name__ == "__main__":
    gamma = 2.0

    # --- case 1: tiny batch, small C -> lane-dense (C, N) path, single tile ---
    k_x, k_t = jax.random.split(jax.random.PRNGKey(0))
    N1, C1 = 8, 4
    x1 = jax.random.normal(k_x, (N1, C1), dtype=jnp.float32)
    t1 = jax.random.randint(k_t, (N1,), 0, C1, dtype=jnp.int32)
    a1 = jnp.ones((C1,), dtype=jnp.float32)          # module default alpha
    got1 = jax.block_until_ready(efocal_loss(x1, t1, a1, gamma=gamma))
    ref1 = _reference_loss(x1, t1, a1, gamma)
    assert jnp.allclose(got1, ref1, rtol=1e-5, atol=1e-5), (got1, ref1)

    # --- case 2: lane-dense path, multiple tiles with a partial tail tile ---
    k_x2, k_t2, k_a2 = jax.random.split(jax.random.PRNGKey(1), 3)
    N2, C2 = 300, 21
    x2 = jax.random.normal(k_x2, (N2, C2), dtype=jnp.float32)
    t2 = jax.random.randint(k_t2, (N2,), 0, C2, dtype=jnp.int32)
    a2 = jax.random.uniform(k_a2, (C2,), dtype=jnp.float32, minval=0.25, maxval=1.0)
    got2 = jax.block_until_ready(
        efocal_loss(x2, t2, a2, gamma=gamma, size_average=True, max_tile_n=128))
    ref2 = _reference_loss(x2, t2, a2, gamma)
    assert jnp.allclose(got2, ref2, rtol=1e-5, atol=1e-5), (got2, ref2)

    # --- case 3: C >= 128 -> natural (N, C) path, multi-tile, sum reduction ---
    k_x3, k_t3, k_a3 = jax.random.split(jax.random.PRNGKey(2), 3)
    N3, C3 = 200, 160
    x3 = jax.random.normal(k_x3, (N3, C3), dtype=jnp.float32)
    t3 = jax.random.randint(k_t3, (N3,), 0, C3, dtype=jnp.int32)
    a3 = jax.random.uniform(k_a3, (C3,), dtype=jnp.float32, minval=0.25, maxval=1.0)
    got3 = jax.block_until_ready(
        efocal_loss(x3, t3, a3, gamma=gamma, size_average=False, max_tile_n=64))
    ref3 = _reference_loss(x3, t3, a3, gamma, size_average=False)
    assert jnp.allclose(got3, ref3, rtol=1e-5, atol=1e-4), (got3, ref3)

    print("KERNEL_OK")
</pallas_src>

<mosaic_0001>
module attributes {stable_mosaic.version = 11 : i64} {
  func.func @_efocal_kernel_cn(%arg0: i32, %arg1: memref<4x8xf32, #tpu.memory_space<vmem>>, %arg2: memref<1x8xi32, #tpu.memory_space<vmem>>, %arg3: memref<4x1xf32, #tpu.memory_space<vmem>>, %arg4: memref<1x1xf32, #tpu.memory_space<vmem>>) attributes {dimension_semantics = [#tpu.dimension_semantics<parallel>], iteration_bounds = array<i64: 1>, scalar_prefetch = 0 : i64, scratch_operands = 0 : i64, tpu.core_type = #tpu.core_type<tc>, window_params = [{transform_indices = @transform_0, window_bounds = array<i64: 4, 8>}, {transform_indices = @transform_1, window_bounds = array<i64: 1, 8>}, {pipeline_mode = #tpu.pipeline_mode<synchronous>, transform_indices = @transform_2, window_bounds = array<i64: 4, 1>}, {transform_indices = @transform_3, window_bounds = array<i64: 1, 1>}]} {
    %c0 = arith.constant 0 : index
    %c0_0 = arith.constant 0 : index
    %0 = vector.load %arg1[%c0, %c0_0] : memref<4x8xf32, #tpu.memory_space<vmem>>, vector<4x8xf32>
    %c0_1 = arith.constant 0 : index
    %c0_2 = arith.constant 0 : index
    %1 = vector.load %arg2[%c0_1, %c0_2] : memref<1x8xi32, #tpu.memory_space<vmem>>, vector<1x8xi32>
    %c0_3 = arith.constant 0 : index
    %c0_4 = arith.constant 0 : index
    %2 = vector.load %arg3[%c0_3, %c0_4] : memref<4x1xf32, #tpu.memory_space<vmem>>, vector<4x1xf32>
    %3 = tpu.iota {dimensions = array<i32: 0>} : vector<4x8xi32>
    %4 = vector.broadcast %1 : vector<1x8xi32> to vector<4x8xi32>
    %5 = arith.cmpi eq, %3, %4 : vector<4x8xi32>
    %cst = arith.constant dense<0xFF800000> : vector<8xf32>
    %6 = vector.multi_reduction <maximumf>, %0, %cst [0] : vector<4x8xf32> to vector<8xf32>
    %7 = vector.shape_cast %6 : vector<8xf32> to vector<1x8xf32>
    %8 = vector.broadcast %7 : vector<1x8xf32> to vector<4x8xf32>
    %9 = arith.subf %0, %8 : vector<4x8xf32>
    %10 = math.exp %9 : vector<4x8xf32>
    %cst_5 = arith.constant dense<0.000000e+00> : vector<8xf32>
    %11 = vector.multi_reduction <add>, %10, %cst_5 [0] : vector<4x8xf32> to vector<8xf32>
    %12 = vector.shape_cast %11 : vector<8xf32> to vector<1x8xf32>
    %cst_6 = arith.constant 0.000000e+00 : f32
    %13 = vector.broadcast %cst_6 : f32 to vector<4x8xf32>
    %14 = arith.select %5, %0, %13 : vector<4x8xi1>, vector<4x8xf32>
    %cst_7 = arith.constant dense<0.000000e+00> : vector<8xf32>
    %15 = vector.multi_reduction <add>, %14, %cst_7 [0] : vector<4x8xf32> to vector<8xf32>
    %16 = vector.shape_cast %15 : vector<8xf32> to vector<1x8xf32>
    %17 = arith.subf %16, %7 : vector<1x8xf32>
    %18 = math.log %12 : vector<1x8xf32>
    %19 = arith.subf %17, %18 : vector<1x8xf32>
    %20 = math.exp %19 : vector<1x8xf32>
    %cst_8 = arith.constant 0.000000e+00 : f32
    %21 = vector.shape_cast %2 : vector<4x1xf32> to vector<4x1xf32>
    %22 = vector.broadcast %21 : vector<4x1xf32> to vector<4x8xf32>
    %23 = vector.broadcast %cst_8 : f32 to vector<4x8xf32>
    %24 = arith.select %5, %22, %23 : vector<4x8xi1>, vector<4x8xf32>
    %cst_9 = arith.constant dense<0.000000e+00> : vector<8xf32>
    %25 = vector.multi_reduction <add>, %24, %cst_9 [0] : vector<4x8xf32> to vector<8xf32>
    %26 = vector.shape_cast %25 : vector<8xf32> to vector<1x8xf32>
    %cst_10 = arith.constant 0.000000e+00 : f32
    %27 = vector.broadcast %cst_10 : f32 to vector<1x8xf32>
    %28 = arith.subf %27, %26 : vector<1x8xf32>
    %cst_11 = arith.constant -2.000000e+00 : f32
    %29 = vector.broadcast %cst_11 : f32 to vector<1x8xf32>
    %30 = arith.mulf %29, %20 : vector<1x8xf32>
    %31 = math.exp %30 : vector<1x8xf32>
    %32 = arith.mulf %28, %31 : vector<1x8xf32>
    %33 = arith.mulf %32, %19 : vector<1x8xf32>
    %c8_i32 = arith.constant 8 : i32
    %34 = arith.muli %arg0, %c8_i32 : i32
    %35 = tpu.iota {dimensions = array<i32: 1>} : vector<1x8xi32>
    %36 = vector.broadcast %34 : i32 to vector<1x8xi32>
    %37 = arith.addi %36, %35 : vector<1x8xi32>
    %c8_i32_12 = arith.constant 8 : i32
    %38 = vector.broadcast %c8_i32_12 : i32 to vector<1x8xi32>
    %39 = arith.cmpi slt, %37, %38 : vector<1x8xi32>
    %cst_13 = arith.constant 0.000000e+00 : f32
    %40 = vector.broadcast %cst_13 : f32 to vector<1x8xf32>
    %41 = arith.select %39, %33, %40 : vector<1x8xi1>, vector<1x8xf32>
    %42 = vector.shape_cast %41 : vector<1x8xf32> to vector<1x1x8xf32>
    %cst_14 = arith.constant dense<0.000000e+00> : vector<1xf32>
    %43 = vector.multi_reduction <add>, %42, %cst_14 [1, 2] : vector<1x1x8xf32> to vector<1xf32>
    %44 = vector.shape_cast %43 : vector<1xf32> to vector<1x1x1xf32>
    %45 = vector.extract %44[0, 0, 0] : f32 from vector<1x1x1xf32>
    %46 = vector.broadcast %45 : f32 to vector<1x1xf32>
    %c0_15 = arith.constant 0 : index
    %c0_16 = arith.constant 0 : index
    %47 = vector.load %arg4[%c0_15, %c0_16] : memref<1x1xf32, #tpu.memory_space<vmem>>, vector<1x1xf32>
    tpu.vector_store %arg4[%c0_15, %c0_16], %46 {strides = array<i32>} : memref<1x1xf32, #tpu.memory_space<vmem>>, vector<1x1xf32>,
    return
  }
  func.func @transform_0(%arg0: i32) -> (i32, i32) {
    %c0_i32 = arith.constant 0 : i32
    %c0_i32_0 = arith.constant 0 : i32
    return %c0_i32, %arg0 : i32, i32
  }
  func.func @transform_1(%arg0: i32) -> (i32, i32) {
    %c0_i32 = arith.constant 0 : i32
    %c0_i32_0 = arith.constant 0 : i32
    return %c0_i32, %arg0 : i32, i32
  }
  func.func @transform_2(%arg0: i32) -> (i32, i32) {
    %c0_i32 = arith.constant 0 : i32
    %c0_i32_0 = arith.constant 0 : i32
    %c0_i32_1 = arith.constant 0 : i32
    return %c0_i32, %c0_i32_0 : i32, i32
  }
  func.func @transform_3(%arg0: i32) -> (i32, i32) {
    %c0_i32 = arith.constant 0 : i32
    %c0_i32_0 = arith.constant 0 : i32
    return %arg0, %c0_i32 : i32, i32
  }
}

</mosaic_0001>

<llo_original>
// kernel: tpu_custom_call.1
$region0: #{tpu_custom_call.1}
  #allocation0 [shape = 'u32[]', space=smem, size = 0x4, offset = 0x4, fixed_abs, tag = 'smem constant byte address 0x4 - core index']
  #allocation1 [shape = 'u32[144,128]{1,0:T(1,128)}', space=vmem, size = 0x12000, scoped, tag = 'internal scratch']
  %s0 = inlined_call_operand.vmem [shape: f32[4,8], index: 0, kind: input, shape index: {}]
  %s1 = inlined_call_operand.vmem [shape: s32[1,8], index: 1, kind: input, shape index: {}]
  %s2 = inlined_call_operand.vmem [shape: f32[4,1], index: 2, kind: input, shape index: {}]
  %s3 = inlined_call_operand.hbm [shape: f32[1,1], index: 3, kind: output, shape index: {}]
  %s4 = sld [smem:[#allocation0]]
  $region22: #{tpu_custom_call.1} parent=0
    _
  %s6 = ssub.s32 1, %s4
  %s7 = scalar_select 0, %s6, %s4
  $region1: #{tpu_custom_call.1} parent=0
    #allocation2 [shape = 'u8[512]{0}', space=vmem, size = 0x400, scoped, tag = 'output window, operand 0, single buffered']
    #allocation3 [shape = 's32[1]{0}', space=sflag, size = 0x4, scoped, tag = 'scoped memory for tpu_custom_call.1']
    %8 = vsyncpa [#allocation3], 0
    // Predicated region
    $region2: #{tpu_custom_call.1} parent=1 // pred_check
      _
    $region3: #{tpu_custom_call.1} parent=1 // pred_check_branch
      %10 = sbr.rel (0) target = $region5
    $region4: #{tpu_custom_call.1} parent=1 // pred_region
      _
    $region5: #{tpu_custom_call.1} parent=1 // pred_fallthru
      _
    // Predicated region
    $region6: #{tpu_custom_call.1} parent=1 // pred_check
      _
    $region7: #{tpu_custom_call.1} parent=1 // pred_check_branch
      %12 = sbr.rel (0) target = $region9
    $region8: #{tpu_custom_call.1} parent=1 // pred_region
      _
    $region9: #{tpu_custom_call.1} parent=1 // pred_fallthru
      _
    // Predicated region
    $region10: #{tpu_custom_call.1} parent=1 // pred_check
      _
    $region11: #{tpu_custom_call.1} parent=1 // pred_check_branch
      %14 = sbr.rel (0) target = $region13
    $region12: #{tpu_custom_call.1} parent=1 // pred_region
      _
    $region13: #{tpu_custom_call.1} parent=1 // pred_fallthru
      _
    %v15 = vld [vmem:[%s0] sm:$0xf]
    %v16 = vld [vmem:[%s1] sm:$0x1]
    %v17 = vld [vmem:[%s2] sm:$0xf]
    %v18 = vlaneseq
    %v19 = vshrl.u32 %v18, 7
    %v20 = vlaneseq
    %v21 = vshrl.u32 %v20, 7
    %v22 = vsub.s32 0, %v21
    %v23 = vrot.slane %v16, %v22
    %vm24 = vcmp.eq.s32.totalorder %v19, %v23
    %vm25 = vcmask 60416
    %v26 = vsel %vm25, %v15, -inf
    %v27 = vrot.slane %v26, 4
    %v28 = vmax.f32 %v26, %v27
    %v29 = vrot.slane %v28, 2
    %v30 = vmax.f32 %v28, %v29
    %v31 = vrot.slane %v30, 1
    %v32 = vmax.f32 %v30, %v31
    %v33 = vsub.f32 %v15, %v32
    %v34 = vmul.f32 %v33, 1.442695
    %v35 = vpow.pop %v34
    %v36 = vsel %vm25, %v35, 0.0
    %v37 = vrot.slane %v36, 4
    %v38 = vadd.f32 %v36, %v37
    %v39 = vrot.slane %v38, 2
    %v40 = vadd.f32 %v38, %v39
    %v41 = vrot.slane %v40, 1
    %v42 = vadd.f32 %v40, %v41
    %v43 = vsel %vm24, %v15, 0.0
    %v44 = vsel %vm25, %v43, 0.0
    %v45 = vrot.slane %v44, 4
    %v46 = vadd.f32 %v44, %v45
    %v47 = vrot.slane %v46, 2
    %v48 = vadd.f32 %v46, %v47
    %v49 = vrot.slane %v48, 1
    %v50 = vadd.f32 %v48, %v49
    %v51 = vsub.f32 %v50, %v32
    %v52 = vlog2.pop %v42
    %v53 = vmul.f32 %v52, 0.6931472
    %v54 = vsub.f32 %v51, %v53
    %v55 = vmul.f32 %v54, 1.442695
    %v56 = vpow.pop %v55
    %58 = vset.pattern.permute.xlu0 0
    %59 = vperm.xlu0 %58, %v17
    %v60 = vpop.permute.xlu0 %59
    %v62 = vsel %vm24, %v60, 0.0
    %v63 = vsel %vm25, %v62, 0.0
    %v64 = vrot.slane %v63, 4
    %v65 = vadd.f32 %v63, %v64
    %v66 = vrot.slane %v65, 2
    %v67 = vadd.f32 %v65, %v66
    %v68 = vrot.slane %v67, 1
    %v69 = vadd.f32 %v67, %v68
    %v70 = vsub.f32 0.0, %v69
    %v71 = vmul.f32 %v56, -2.0
    %v72 = vmul.f32 %v71, 1.442695
    %v73 = vpow.pop %v72
    %v74 = vmul.f32 %v70, %v73
    %v75 = vmul.f32 %v74, %v54
    %s76 = smul.u32 0, 8
    %v77 = vlaneseq
    %v78 = vand.u32 %v77, 127
    %v79 = vstv %s76
    %v80 = vadd.s32 %v79, %v78
    %vm81 = vcmp.lt.s32.totalorder %v80, 8
    %v82 = vsel %vm81, %v75, 0.0
    %vm83 = vcmask 57344
    %v84 = vsel %vm83, %v82, 0.0
    %85 = vadd.xlane.f32.xlu0 %v84
    %v86 = vpop.xlane.xlu0 %85
    %v87 = vrot.slane %v86, 4
    %v88 = vadd.f32 %v86, %v87
    %v89 = vrot.slane %v88, 2
    %v90 = vadd.f32 %v88, %v89
    %v91 = vrot.slane %v90, 1
    %v92 = vadd.f32 %v90, %v91
    %s93 = vtos %v92
    %v94 = vstv %s93
    %vm95 = vcmask 0
    %96 = vst.msk [vmem:[#allocation2] sm:$0x1] %vm95, %v94
    // Predicated region
    $region14: #{tpu_custom_call.1} parent=1 // pred_check
      _
    $region15: #{tpu_custom_call.1} parent=1 // pred_check_branch
      %98 = sbr.rel (0) target = $region17
    $region16: #{tpu_custom_call.1} parent=1 // pred_region
      %s100 = ssub.s32 16, 16
      %101 = vsyncadd [#allocation3], %s100
      %s103 = sshll.u32 [#allocation2], 4
      %s104 = int_to_ptr.vmem [resolvable:$true] %s103
      %106 = dma.vmem_to_hbm [thread:$0]  %s104, 16, %s3, [#allocation3]
    $region17: #{tpu_custom_call.1} parent=1 // pred_fallthru
      _
    // Predicated region
    $region18: #{tpu_custom_call.1} parent=1 // pred_check
      _
    $region19: #{tpu_custom_call.1} parent=1 // pred_check_branch
      %108 = sbr.rel (0) target = $region21
    $region20: #{tpu_custom_call.1} parent=1 // pred_region
      %109 = dma.done [#allocation3], 16
    $region21: #{tpu_custom_call.1} parent=1 // pred_fallthru
      _
    %110 = vsyncpa [#allocation3], 1

</llo_original>
